<compile_context>
chip_gen: v7x
topology: tpu7x:2x2x1
jax: 0.10.0
libtpu: 0.0.40
codegen_flags: <defaults>
</compile_context>

<pallas_src>
import functools

import jax
import jax.numpy as jnp
from jax.experimental import pallas as pl
from jax.experimental.pallas import tpu as pltpu

SMOOTH = 0.001
THRESHOLD = 0.5   # threshold 0.5 is what makes sigmoid(p) > 0.5 <=> p > 0
# fp32 exp(x) flushes to zero for x < ~-87.3, so softmax(x)_c = exp(x_c-m)/sum > 0
# <=> x_c - m > LOG_UNDERFLOW.  (The exact cutoff of the degenerate reference is
# FP-implementation-defined; any value in this don't-care band matches it for
# non-pathological logits.)
LOG_UNDERFLOW = -87.0


def _cdiv(a, b):
    return -(-a // b)


def _round_up(x, m):
    return ((x + m - 1) // m) * m


def _dice_partial_kernel(logits_ref, target_ref, out_ref, *, C, H, NTps, needs_mask):
    """Accumulate (inter, psum, tsum) lane-wise partial sums into out_ref (3, W)."""
    TH, W = target_ref.shape
    n = pl.program_id(2)

    @pl.when(n == 0)
    def _():
        out_ref[...] = jnp.zeros_like(out_ref)

    # Channel-wise max (softmax normalizer); background channel 0 included.
    m = logits_ref[0]
    for c in range(1, C):
        m = jnp.maximum(m, logits_ref[c])

    t = target_ref[...]

    valid = None
    if needs_mask:
        # Global row index per sublane; masks the ragged last row-block and the
        # duplicated (clamped) tail block of an uneven split.
        s = pl.program_id(1)
        row0 = (s * NTps + n) * TH
        rows = row0 + jax.lax.broadcasted_iota(jnp.int32, (TH, 1), 0)
        valid = rows < H                                   # (TH, 1)

    inter_r = jnp.zeros((1, W), jnp.float32)
    psum_r = jnp.zeros((1, W), jnp.float32)
    tsum_r = jnp.zeros((1, W), jnp.float32)
    for c in range(1, C):
        # sigmoid(softmax(x)_c) > 0.5  <=>  exp(x_c - m) > 0 (fp32 underflow)
        pc = (logits_ref[c] - m) > LOG_UNDERFLOW           # (TH, W) bool
        tc = t == c                                        # (TH, W) bool
        if valid is not None:
            pc = jnp.logical_and(pc, valid)
            tc = jnp.logical_and(tc, valid)
        inter_r += jnp.sum(jnp.logical_and(pc, tc).astype(jnp.float32),
                           axis=0, keepdims=True)
        psum_r += jnp.sum(pc.astype(jnp.float32), axis=0, keepdims=True)
        tsum_r += jnp.sum(tc.astype(jnp.float32), axis=0, keepdims=True)

    out_ref[0:1, :] += inter_r
    out_ref[1:2, :] += psum_r
    out_ref[2:3, :] += tsum_r


def _vmem_limit_bytes():
    phys = 64 << 20
    try:
        info = pltpu.get_tpu_info()
        phys = int(getattr(info, "vmem_capacity_bytes", phys))
    except Exception:
        pass
    # ~48 MiB on v7x (64 MiB physical), ~96 MiB on v5e/v6e (128 MiB physical).
    return (phys * 3) // 4


def _pick_row_tile(H, W, C, logits_isz, target_isz, vmem_limit, max_pixels):
    if max_pixels is None:
        # Conservative per-pixel VMEM estimate: double-buffered logits + label
        # blocks plus in-kernel elementwise temporaries.
        per_px = 2 * C * logits_isz + 2 * target_isz + 10 * 4
        max_pixels = int(vmem_limit * 0.6) // per_px
        # Several MB per grid step amortizes the ~0.35us fixed per-step cost;
        # past ~6 MB/step the roofline gain is negligible.
        max_pixels = min(max_pixels, 256 * 1024)
    th = max(max_pixels // W, 8)
    if th >= H:
        return H                       # full extent: always a legal block dim
    return (th // 8) * 8               # second-minor block dim must be /8 (or ==H)


def softmax_dice_metric(logits, target, *, max_pixels_per_step=None):
    """logits: [B, C, H, W] float; target: [B, 1, H, W] or [B, H, W] int labels."""
    B, C, H, W = logits.shape
    assert C >= 2, "need a background channel plus at least one foreground class"
    target = target.reshape(B, H, W)   # drop the channel dim (free reshape, no cast)

    vmem_limit = _vmem_limit_bytes()
    TH = _pick_row_tile(H, W, C, logits.dtype.itemsize, target.dtype.itemsize,
                        vmem_limit, max_pixels_per_step)

    # For B == 1, split the row range into two independent "parallel" grid
    # entries so both TensorCores of a v7x chip get work.
    NS = 1
    if B == 1 and H >= 16:
        NS = 2
        TH = min(TH, _round_up(_cdiv(H, 2), 8))

    NT = _cdiv(H, TH)                  # row blocks over the image
    NTps = _cdiv(NT, NS)               # row blocks per split
    needs_mask = (NT * TH != H) or (NS * NTps != NT)

    def block_index(s, n):
        # Clamp so a duplicated tail block of an uneven split never DMAs out of
        # bounds; its contribution is zeroed by the in-kernel row mask.
        return jnp.minimum(s * NTps + n, NT - 1)

    kernel = functools.partial(_dice_partial_kernel, C=C, H=H, NTps=NTps,
                               needs_mask=needs_mask)

    cost = pl.CostEstimate(
        flops=B * H * W * (9 * (C - 1) + C),
        transcendentals=0,
        bytes_accessed=B * H * W * (C * logits.dtype.itemsize
                                    + target.dtype.itemsize) + B * NS * 3 * W * 4,
    )

    partials = pl.pallas_call(
        kernel,
        grid=(B, NS, NTps),
        in_specs=[
            pl.BlockSpec((None, C, TH, W),
                         lambda b, s, n: (b, 0, block_index(s, n), 0)),
            pl.BlockSpec((None, TH, W),
                         lambda b, s, n: (b, block_index(s, n), 0)),
        ],
        out_specs=pl.BlockSpec((None, None, 3, W), lambda b, s, n: (b, s, 0, 0)),
        out_shape=jax.ShapeDtypeStruct((B, NS, 3, W), jnp.float32),
        compiler_params=pltpu.CompilerParams(
            dimension_semantics=("parallel", "parallel", "arbitrary"),
            vmem_limit_bytes=vmem_limit,
        ),
        cost_estimate=cost,
    )(logits, target)

    # Tiny combine in the wrapper: sum partial sums over splits and lanes,
    # then the dice ratio and batch mean.
    sums = jnp.sum(partials, axis=(1, 3))                  # (B, 3)
    inter, psum, tsum = sums[:, 0], sums[:, 1], sums[:, 2]
    dice = (2.0 * inter + SMOOTH) / (psum + tsum + SMOOTH)
    return jnp.mean(dice)


def _reference(logits, target):
    # Pure-JAX reference mirroring the PyTorch module.
    B, C, H, W = logits.shape
    probs = jax.nn.softmax(logits.astype(jnp.float32), axis=1)
    preds = (jax.nn.sigmoid(probs[:, 1:]) > THRESHOLD).astype(jnp.float32)
    tsq = target.reshape(B, H, W)
    trues = jnp.stack([(tsq == c).astype(jnp.float32) for c in range(1, C)], axis=1)
    p = preds.reshape(B, -1)
    t = trues.reshape(B, -1)
    inter = jnp.sum(p * t, axis=1)
    return jnp.mean((2.0 * inter + SMOOTH) /
                    (jnp.sum(p, axis=1) + jnp.sum(t, axis=1) + SMOOTH))


if __name__ == "__main__":
    key = jax.random.PRNGKey(0)
    keys = jax.random.split(key, 6)

    # Case 1: the module's typical shape (channel 0 = background, classes 1..4).
    B, C, H, W = 2, 5, 16, 16
    logits = jax.random.normal(keys[0], (B, C, H, W), dtype=jnp.float32)
    target = jax.random.randint(keys[1], (B, 1, H, W), 0, C, dtype=jnp.int32)
    out = jax.block_until_ready(softmax_dice_metric(logits, target))
    ref = _reference(logits, target)
    assert jnp.allclose(out, ref, atol=1e-5, rtol=1e-5), (out, ref)

    # Case 2: B=1 exercises the 2-way "parallel" row split (v7x megacore path).
    logits1 = jax.random.normal(keys[2], (1, C, H, W), dtype=jnp.float32)
    target1 = jax.random.randint(keys[3], (1, 1, H, W), 0, C, dtype=jnp.int32)
    out1 = jax.block_until_ready(softmax_dice_metric(logits1, target1))
    ref1 = _reference(logits1, target1)
    assert jnp.allclose(out1, ref1, atol=1e-5, rtol=1e-5), (out1, ref1)

    # Case 3: ragged last row-block + clamped duplicate block of an uneven split.
    H3 = 20
    logits3 = jax.random.normal(keys[4], (1, C, H3, W), dtype=jnp.float32)
    target3 = jax.random.randint(keys[5], (1, 1, H3, W), 0, C, dtype=jnp.int32)
    out3 = jax.block_until_ready(
        softmax_dice_metric(logits3, target3, max_pixels_per_step=128))
    ref3 = _reference(logits3, target3)
    assert jnp.allclose(out3, ref3, atol=1e-5, rtol=1e-5), (out3, ref3)

    print("KERNEL_OK")
</pallas_src>

<mosaic_0001>
module attributes {stable_mosaic.version = 11 : i64} {
  func.func @_dice_partial_kernel(%arg0: i32, %arg1: i32, %arg2: i32, %arg3: memref<1x5x16x16xf32, #tpu.memory_space<vmem>>, %arg4: memref<1x16x16xi32, #tpu.memory_space<vmem>>, %arg5: memref<1x1x3x16xf32, #tpu.memory_space<vmem>>) attributes {dimension_semantics = [#tpu.dimension_semantics<parallel>, #tpu.dimension_semantics<parallel>, #tpu.dimension_semantics<arbitrary>], iteration_bounds = array<i64: 2, 1, 1>, scalar_prefetch = 0 : i64, scratch_operands = 0 : i64, tpu.core_type = #tpu.core_type<tc>, window_params = [{transform_indices = @transform_0, window_bounds = array<i64: 1, 5, 16, 16>}, {transform_indices = @transform_1, window_bounds = array<i64: 1, 16, 16>}, {transform_indices = @transform_2, window_bounds = array<i64: 1, 1, 3, 16>}]} {
    %c0_i32 = arith.constant 0 : i32
    %0 = arith.cmpi eq, %arg2, %c0_i32 : i32
    %1 = arith.extui %0 : i1 to i32
    %c0_i32_0 = arith.constant 0 : i32
    %2 = arith.cmpi ne, %1, %c0_i32_0 : i32
    scf.if %2 {
      %cst_77 = arith.constant 0.000000e+00 : f32
      %132 = vector.broadcast %cst_77 : f32 to vector<3x16xf32>
      %c0_78 = arith.constant 0 : index
      %c0_79 = arith.constant 0 : index
      %c0_80 = arith.constant 0 : index
      %c0_81 = arith.constant 0 : index
      %133 = vector.load %arg5[%c0_78, %c0_79, %c0_80, %c0_81] : memref<1x1x3x16xf32, #tpu.memory_space<vmem>>, vector<1x1x3x16xf32>
      %134 = vector.shape_cast %133 : vector<1x1x3x16xf32> to vector<3x16xf32>
      %135 = vector.shape_cast %132 : vector<3x16xf32> to vector<1x1x3x16xf32>
      tpu.vector_store %arg5[%c0_78, %c0_79, %c0_80, %c0_81], %135 {strides = array<i32>} : memref<1x1x3x16xf32, #tpu.memory_space<vmem>>, vector<1x1x3x16xf32>,
    } else {
    }
    %c0 = arith.constant 0 : index
    %c0_1 = arith.constant 0 : index
    %c0_2 = arith.constant 0 : index
    %c0_3 = arith.constant 0 : index
    %3 = vector.load %arg3[%c0, %c0_1, %c0_2, %c0_3] : memref<1x5x16x16xf32, #tpu.memory_space<vmem>>, vector<1x1x16x16xf32>
    %4 = vector.shape_cast %3 : vector<1x1x16x16xf32> to vector<16x16xf32>
    %c0_4 = arith.constant 0 : index
    %c1 = arith.constant 1 : index
    %c0_5 = arith.constant 0 : index
    %c0_6 = arith.constant 0 : index
    %5 = vector.load %arg3[%c0_4, %c1, %c0_5, %c0_6] : memref<1x5x16x16xf32, #tpu.memory_space<vmem>>, vector<1x1x16x16xf32>
    %6 = vector.shape_cast %5 : vector<1x1x16x16xf32> to vector<16x16xf32>
    %7 = arith.maximumf %4, %6 : vector<16x16xf32>
    %c0_7 = arith.constant 0 : index
    %c2 = arith.constant 2 : index
    %c0_8 = arith.constant 0 : index
    %c0_9 = arith.constant 0 : index
    %8 = vector.load %arg3[%c0_7, %c2, %c0_8, %c0_9] : memref<1x5x16x16xf32, #tpu.memory_space<vmem>>, vector<1x1x16x16xf32>
    %9 = vector.shape_cast %8 : vector<1x1x16x16xf32> to vector<16x16xf32>
    %10 = arith.maximumf %7, %9 : vector<16x16xf32>
    %c0_10 = arith.constant 0 : index
    %c3 = arith.constant 3 : index
    %c0_11 = arith.constant 0 : index
    %c0_12 = arith.constant 0 : index
    %11 = vector.load %arg3[%c0_10, %c3, %c0_11, %c0_12] : memref<1x5x16x16xf32, #tpu.memory_space<vmem>>, vector<1x1x16x16xf32>
    %12 = vector.shape_cast %11 : vector<1x1x16x16xf32> to vector<16x16xf32>
    %13 = arith.maximumf %10, %12 : vector<16x16xf32>
    %c0_13 = arith.constant 0 : index
    %c4 = arith.constant 4 : index
    %c0_14 = arith.constant 0 : index
    %c0_15 = arith.constant 0 : index
    %14 = vector.load %arg3[%c0_13, %c4, %c0_14, %c0_15] : memref<1x5x16x16xf32, #tpu.memory_space<vmem>>, vector<1x1x16x16xf32>
    %15 = vector.shape_cast %14 : vector<1x1x16x16xf32> to vector<16x16xf32>
    %16 = arith.maximumf %13, %15 : vector<16x16xf32>
    %c0_16 = arith.constant 0 : index
    %c0_17 = arith.constant 0 : index
    %c0_18 = arith.constant 0 : index
    %17 = vector.load %arg4[%c0_16, %c0_17, %c0_18] : memref<1x16x16xi32, #tpu.memory_space<vmem>>, vector<1x16x16xi32>
    %18 = vector.shape_cast %17 : vector<1x16x16xi32> to vector<16x16xi32>
    %cst = arith.constant 0.000000e+00 : f32
    %19 = vector.broadcast %cst : f32 to vector<1x16xf32>
    %cst_19 = arith.constant 0.000000e+00 : f32
    %20 = vector.broadcast %cst_19 : f32 to vector<1x16xf32>
    %cst_20 = arith.constant 0.000000e+00 : f32
    %21 = vector.broadcast %cst_20 : f32 to vector<1x16xf32>
    %c0_21 = arith.constant 0 : index
    %c1_22 = arith.constant 1 : index
    %c0_23 = arith.constant 0 : index
    %c0_24 = arith.constant 0 : index
    %22 = vector.load %arg3[%c0_21, %c1_22, %c0_23, %c0_24] : memref<1x5x16x16xf32, #tpu.memory_space<vmem>>, vector<1x1x16x16xf32>
    %23 = vector.shape_cast %22 : vector<1x1x16x16xf32> to vector<16x16xf32>
    %24 = arith.subf %23, %16 : vector<16x16xf32>
    %cst_25 = arith.constant -8.700000e+01 : f32
    %25 = vector.broadcast %cst_25 : f32 to vector<16x16xf32>
    %26 = arith.cmpf ogt, %24, %25 : vector<16x16xf32>
    %c1_i32 = arith.constant 1 : i32
    %27 = vector.broadcast %c1_i32 : i32 to vector<16x16xi32>
    %28 = arith.cmpi eq, %18, %27 : vector<16x16xi32>
    %29 = arith.andi %26, %28 : vector<16x16xi1>
    %30 = arith.extui %29 : vector<16x16xi1> to vector<16x16xi32>
    %31 = arith.sitofp %30 : vector<16x16xi32> to vector<16x16xf32>
    %cst_26 = arith.constant dense<0.000000e+00> : vector<16xf32>
    %32 = vector.multi_reduction <add>, %31, %cst_26 [0] : vector<16x16xf32> to vector<16xf32>
    %33 = vector.shape_cast %32 : vector<16xf32> to vector<1x16xf32>
    %34 = arith.addf %19, %33 : vector<1x16xf32>
    %35 = arith.extui %26 : vector<16x16xi1> to vector<16x16xi32>
    %36 = arith.sitofp %35 : vector<16x16xi32> to vector<16x16xf32>
    %cst_27 = arith.constant dense<0.000000e+00> : vector<16xf32>
    %37 = vector.multi_reduction <add>, %36, %cst_27 [0] : vector<16x16xf32> to vector<16xf32>
    %38 = vector.shape_cast %37 : vector<16xf32> to vector<1x16xf32>
    %39 = arith.addf %20, %38 : vector<1x16xf32>
    %40 = arith.extui %28 : vector<16x16xi1> to vector<16x16xi32>
    %41 = arith.sitofp %40 : vector<16x16xi32> to vector<16x16xf32>
    %cst_28 = arith.constant dense<0.000000e+00> : vector<16xf32>
    %42 = vector.multi_reduction <add>, %41, %cst_28 [0] : vector<16x16xf32> to vector<16xf32>
    %43 = vector.shape_cast %42 : vector<16xf32> to vector<1x16xf32>
    %44 = arith.addf %21, %43 : vector<1x16xf32>
    %c0_29 = arith.constant 0 : index
    %c2_30 = arith.constant 2 : index
    %c0_31 = arith.constant 0 : index
    %c0_32 = arith.constant 0 : index
    %45 = vector.load %arg3[%c0_29, %c2_30, %c0_31, %c0_32] : memref<1x5x16x16xf32, #tpu.memory_space<vmem>>, vector<1x1x16x16xf32>
    %46 = vector.shape_cast %45 : vector<1x1x16x16xf32> to vector<16x16xf32>
    %47 = arith.subf %46, %16 : vector<16x16xf32>
    %cst_33 = arith.constant -8.700000e+01 : f32
    %48 = vector.broadcast %cst_33 : f32 to vector<16x16xf32>
    %49 = arith.cmpf ogt, %47, %48 : vector<16x16xf32>
    %c2_i32 = arith.constant 2 : i32
    %50 = vector.broadcast %c2_i32 : i32 to vector<16x16xi32>
    %51 = arith.cmpi eq, %18, %50 : vector<16x16xi32>
    %52 = arith.andi %49, %51 : vector<16x16xi1>
    %53 = arith.extui %52 : vector<16x16xi1> to vector<16x16xi32>
    %54 = arith.sitofp %53 : vector<16x16xi32> to vector<16x16xf32>
    %cst_34 = arith.constant dense<0.000000e+00> : vector<16xf32>
    %55 = vector.multi_reduction <add>, %54, %cst_34 [0] : vector<16x16xf32> to vector<16xf32>
    %56 = vector.shape_cast %55 : vector<16xf32> to vector<1x16xf32>
    %57 = arith.addf %34, %56 : vector<1x16xf32>
    %58 = arith.extui %49 : vector<16x16xi1> to vector<16x16xi32>
    %59 = arith.sitofp %58 : vector<16x16xi32> to vector<16x16xf32>
    %cst_35 = arith.constant dense<0.000000e+00> : vector<16xf32>
    %60 = vector.multi_reduction <add>, %59, %cst_35 [0] : vector<16x16xf32> to vector<16xf32>
    %61 = vector.shape_cast %60 : vector<16xf32> to vector<1x16xf32>
    %62 = arith.addf %39, %61 : vector<1x16xf32>
    %63 = arith.extui %51 : vector<16x16xi1> to vector<16x16xi32>
    %64 = arith.sitofp %63 : vector<16x16xi32> to vector<16x16xf32>
    %cst_36 = arith.constant dense<0.000000e+00> : vector<16xf32>
    %65 = vector.multi_reduction <add>, %64, %cst_36 [0] : vector<16x16xf32> to vector<16xf32>
    %66 = vector.shape_cast %65 : vector<16xf32> to vector<1x16xf32>
    %67 = arith.addf %44, %66 : vector<1x16xf32>
    %c0_37 = arith.constant 0 : index
    %c3_38 = arith.constant 3 : index
    %c0_39 = arith.constant 0 : index
    %c0_40 = arith.constant 0 : index
    %68 = vector.load %arg3[%c0_37, %c3_38, %c0_39, %c0_40] : memref<1x5x16x16xf32, #tpu.memory_space<vmem>>, vector<1x1x16x16xf32>
    %69 = vector.shape_cast %68 : vector<1x1x16x16xf32> to vector<16x16xf32>
    %70 = arith.subf %69, %16 : vector<16x16xf32>
    %cst_41 = arith.constant -8.700000e+01 : f32
    %71 = vector.broadcast %cst_41 : f32 to vector<16x16xf32>
    %72 = arith.cmpf ogt, %70, %71 : vector<16x16xf32>
    %c3_i32 = arith.constant 3 : i32
    %73 = vector.broadcast %c3_i32 : i32 to vector<16x16xi32>
    %74 = arith.cmpi eq, %18, %73 : vector<16x16xi32>
    %75 = arith.andi %72, %74 : vector<16x16xi1>
    %76 = arith.extui %75 : vector<16x16xi1> to vector<16x16xi32>
    %77 = arith.sitofp %76 : vector<16x16xi32> to vector<16x16xf32>
    %cst_42 = arith.constant dense<0.000000e+00> : vector<16xf32>
    %78 = vector.multi_reduction <add>, %77, %cst_42 [0] : vector<16x16xf32> to vector<16xf32>
    %79 = vector.shape_cast %78 : vector<16xf32> to vector<1x16xf32>
    %80 = arith.addf %57, %79 : vector<1x16xf32>
    %81 = arith.extui %72 : vector<16x16xi1> to vector<16x16xi32>
    %82 = arith.sitofp %81 : vector<16x16xi32> to vector<16x16xf32>
    %cst_43 = arith.constant dense<0.000000e+00> : vector<16xf32>
    %83 = vector.multi_reduction <add>, %82, %cst_43 [0] : vector<16x16xf32> to vector<16xf32>
    %84 = vector.shape_cast %83 : vector<16xf32> to vector<1x16xf32>
    %85 = arith.addf %62, %84 : vector<1x16xf32>
    %86 = arith.extui %74 : vector<16x16xi1> to vector<16x16xi32>
    %87 = arith.sitofp %86 : vector<16x16xi32> to vector<16x16xf32>
    %cst_44 = arith.constant dense<0.000000e+00> : vector<16xf32>
    %88 = vector.multi_reduction <add>, %87, %cst_44 [0] : vector<16x16xf32> to vector<16xf32>
    %89 = vector.shape_cast %88 : vector<16xf32> to vector<1x16xf32>
    %90 = arith.addf %67, %89 : vector<1x16xf32>
    %c0_45 = arith.constant 0 : index
    %c4_46 = arith.constant 4 : index
    %c0_47 = arith.constant 0 : index
    %c0_48 = arith.constant 0 : index
    %91 = vector.load %arg3[%c0_45, %c4_46, %c0_47, %c0_48] : memref<1x5x16x16xf32, #tpu.memory_space<vmem>>, vector<1x1x16x16xf32>
    %92 = vector.shape_cast %91 : vector<1x1x16x16xf32> to vector<16x16xf32>
    %93 = arith.subf %92, %16 : vector<16x16xf32>
    %cst_49 = arith.constant -8.700000e+01 : f32
    %94 = vector.broadcast %cst_49 : f32 to vector<16x16xf32>
    %95 = arith.cmpf ogt, %93, %94 : vector<16x16xf32>
    %c4_i32 = arith.constant 4 : i32
    %96 = vector.broadcast %c4_i32 : i32 to vector<16x16xi32>
    %97 = arith.cmpi eq, %18, %96 : vector<16x16xi32>
    %98 = arith.andi %95, %97 : vector<16x16xi1>
    %99 = arith.extui %98 : vector<16x16xi1> to vector<16x16xi32>
    %100 = arith.sitofp %99 : vector<16x16xi32> to vector<16x16xf32>
    %cst_50 = arith.constant dense<0.000000e+00> : vector<16xf32>
    %101 = vector.multi_reduction <add>, %100, %cst_50 [0] : vector<16x16xf32> to vector<16xf32>
    %102 = vector.shape_cast %101 : vector<16xf32> to vector<1x16xf32>
    %103 = arith.addf %80, %102 : vector<1x16xf32>
    %104 = arith.extui %95 : vector<16x16xi1> to vector<16x16xi32>
    %105 = arith.sitofp %104 : vector<16x16xi32> to vector<16x16xf32>
    %cst_51 = arith.constant dense<0.000000e+00> : vector<16xf32>
    %106 = vector.multi_reduction <add>, %105, %cst_51 [0] : vector<16x16xf32> to vector<16xf32>
    %107 = vector.shape_cast %106 : vector<16xf32> to vector<1x16xf32>
    %108 = arith.addf %85, %107 : vector<1x16xf32>
    %109 = arith.extui %97 : vector<16x16xi1> to vector<16x16xi32>
    %110 = arith.sitofp %109 : vector<16x16xi32> to vector<16x16xf32>
    %cst_52 = arith.constant dense<0.000000e+00> : vector<16xf32>
    %111 = vector.multi_reduction <add>, %110, %cst_52 [0] : vector<16x16xf32> to vector<16xf32>
    %112 = vector.shape_cast %111 : vector<16xf32> to vector<1x16xf32>
    %113 = arith.addf %90, %112 : vector<1x16xf32>
    %c0_53 = arith.constant 0 : index
    %c0_54 = arith.constant 0 : index
    %c0_55 = arith.constant 0 : index
    %c0_56 = arith.constant 0 : index
    %114 = vector.load %arg5[%c0_53, %c0_54, %c0_55, %c0_56] : memref<1x1x3x16xf32, #tpu.memory_space<vmem>>, vector<1x1x1x16xf32>
    %115 = vector.shape_cast %114 : vector<1x1x1x16xf32> to vector<1x16xf32>
    %116 = arith.addf %115, %103 : vector<1x16xf32>
    %c0_57 = arith.constant 0 : index
    %c0_58 = arith.constant 0 : index
    %c0_59 = arith.constant 0 : index
    %c0_60 = arith.constant 0 : index
    %117 = vector.load %arg5[%c0_57, %c0_58, %c0_59, %c0_60] : memref<1x1x3x16xf32, #tpu.memory_space<vmem>>, vector<1x1x1x16xf32>
    %118 = vector.shape_cast %117 : vector<1x1x1x16xf32> to vector<1x16xf32>
    %119 = vector.shape_cast %116 : vector<1x16xf32> to vector<1x1x1x16xf32>
    tpu.vector_store %arg5[%c0_57, %c0_58, %c0_59, %c0_60], %119 {strides = array<i32>} : memref<1x1x3x16xf32, #tpu.memory_space<vmem>>, vector<1x1x1x16xf32>,
    %c0_61 = arith.constant 0 : index
    %c0_62 = arith.constant 0 : index
    %c1_63 = arith.constant 1 : index
    %c0_64 = arith.constant 0 : index
    %120 = vector.load %arg5[%c0_61, %c0_62, %c1_63, %c0_64] : memref<1x1x3x16xf32, #tpu.memory_space<vmem>>, vector<1x1x1x16xf32>
    %121 = vector.shape_cast %120 : vector<1x1x1x16xf32> to vector<1x16xf32>
    %122 = arith.addf %121, %108 : vector<1x16xf32>
    %c0_65 = arith.constant 0 : index
    %c0_66 = arith.constant 0 : index
    %c1_67 = arith.constant 1 : index
    %c0_68 = arith.constant 0 : index
    %123 = vector.load %arg5[%c0_65, %c0_66, %c1_67, %c0_68] : memref<1x1x3x16xf32, #tpu.memory_space<vmem>>, vector<1x1x1x16xf32>
    %124 = vector.shape_cast %123 : vector<1x1x1x16xf32> to vector<1x16xf32>
    %125 = vector.shape_cast %122 : vector<1x16xf32> to vector<1x1x1x16xf32>
    tpu.vector_store %arg5[%c0_65, %c0_66, %c1_67, %c0_68], %125 {strides = array<i32>} : memref<1x1x3x16xf32, #tpu.memory_space<vmem>>, vector<1x1x1x16xf32>,
    %c0_69 = arith.constant 0 : index
    %c0_70 = arith.constant 0 : index
    %c2_71 = arith.constant 2 : index
    %c0_72 = arith.constant 0 : index
    %126 = vector.load %arg5[%c0_69, %c0_70, %c2_71, %c0_72] : memref<1x1x3x16xf32, #tpu.memory_space<vmem>>, vector<1x1x1x16xf32>
    %127 = vector.shape_cast %126 : vector<1x1x1x16xf32> to vector<1x16xf32>
    %128 = arith.addf %127, %113 : vector<1x16xf32>
    %c0_73 = arith.constant 0 : index
    %c0_74 = arith.constant 0 : index
    %c2_75 = arith.constant 2 : index
    %c0_76 = arith.constant 0 : index
    %129 = vector.load %arg5[%c0_73, %c0_74, %c2_75, %c0_76] : memref<1x1x3x16xf32, #tpu.memory_space<vmem>>, vector<1x1x1x16xf32>
    %130 = vector.shape_cast %129 : vector<1x1x1x16xf32> to vector<1x16xf32>
    %131 = vector.shape_cast %128 : vector<1x16xf32> to vector<1x1x1x16xf32>
    tpu.vector_store %arg5[%c0_73, %c0_74, %c2_75, %c0_76], %131 {strides = array<i32>} : memref<1x1x3x16xf32, #tpu.memory_space<vmem>>, vector<1x1x1x16xf32>,
    return
  }
  func.func @transform_0(%arg0: i32, %arg1: i32, %arg2: i32) -> (i32, i32, i32, i32) {
    %c1_i32 = arith.constant 1 : i32
    %0 = arith.muli %arg1, %c1_i32 : i32
    %1 = arith.addi %0, %arg2 : i32
    %c0_i32 = arith.constant 0 : i32
    %2 = arith.minsi %1, %c0_i32 : i32
    %c0_i32_0 = arith.constant 0 : i32
    %c0_i32_1 = arith.constant 0 : i32
    %c0_i32_2 = arith.constant 0 : i32
    return %arg0, %c0_i32_0, %2, %c0_i32_1 : i32, i32, i32, i32
  }
  func.func @transform_1(%arg0: i32, %arg1: i32, %arg2: i32) -> (i32, i32, i32) {
    %c1_i32 = arith.constant 1 : i32
    %0 = arith.muli %arg1, %c1_i32 : i32
    %1 = arith.addi %0, %arg2 : i32
    %c0_i32 = arith.constant 0 : i32
    %2 = arith.minsi %1, %c0_i32 : i32
    %c0_i32_0 = arith.constant 0 : i32
    %c0_i32_1 = arith.constant 0 : i32
    return %arg0, %2, %c0_i32_0 : i32, i32, i32
  }
  func.func @transform_2(%arg0: i32, %arg1: i32, %arg2: i32) -> (i32, i32, i32, i32) {
    %c0_i32 = arith.constant 0 : i32
    %c0_i32_0 = arith.constant 0 : i32
    %c0_i32_1 = arith.constant 0 : i32
    return %arg0, %arg1, %c0_i32, %c0_i32_0 : i32, i32, i32, i32
  }
}

</mosaic_0001>

<llo_original>
// kernel: tpu_custom_call.1
$region0: #{tpu_custom_call.1}
  #allocation0 [shape = 'u32[]', space=smem, size = 0x4, offset = 0x4, fixed_abs, tag = 'smem constant byte address 0x4 - core index']
  #allocation1 [shape = 'u32[144,128]{1,0:T(1,128)}', space=vmem, size = 0x12000, scoped, tag = 'internal scratch']
  %s0 = inlined_call_operand.hbm [shape: f32[2,5,16,16], index: 0, kind: input, shape index: {}]
  %s1 = inlined_call_operand.hbm [shape: s32[2,16,16], index: 1, kind: input, shape index: {}]
  %s2 = inlined_call_operand.vmem [shape: f32[2,1,3,16], index: 2, kind: output, shape index: {}]
  %s3 = sld [smem:[#allocation0]]
  $region53: #{tpu_custom_call.1} parent=0
    _
  %s5 = ssub.s32 1, %s3
  %s6 = scalar_select 0, %s5, %s3
  $region1: #{tpu_custom_call.1} parent=0
    #allocation2 [shape = 'u8[81920]{0}', space=vmem, size = 0x14000, scoped, tag = 'input window, operand 0']
    #allocation3 [shape = 's32[2]{0}', space=sflag, size = 0x8, scoped, tag = 'scoped memory for tpu_custom_call.1']
    #allocation4 [shape = 'u8[16384]{0}', space=vmem, size = 0x4000, scoped, tag = 'input window, operand 1']
    #allocation5 [shape = 's32[2]{0}', space=sflag, size = 0x8, scoped, tag = 'scoped memory for tpu_custom_call.1']
    %7 = vsyncpa [#allocation3], 0
    %s8 = scalar_lea.sflag [#allocation3], 1
    %9 = vsyncpa %s8, 0
    %10 = vsyncpa [#allocation5], 0
    %s11 = scalar_lea.sflag [#allocation5], 1
    %12 = vsyncpa %s11, 0
    loop: start=0, step=1, limit=4
    $region2: #{tpu_custom_call.1} parent=1 // loop_pre_header
      _
    $region3: #{tpu_custom_call.1} parent=1 // loop_header
      %s14 = sphi 0, %s18
      %p15 = scmp.ge.s32.totalorder %s14, 4
      %s21 = sphi 0, %s40
      %s22 = sphi 0, %s36
      %s23 = sphi 0, %s32
      %s24 = sphi 0, %s21
      %s25 = sphi 0, %s22
      %s26 = sphi 0, %s23
      %s27 = sphi 0, %s24
      %s28 = sphi 0, %s25
      %s29 = sphi 0, %s26
      %s51 = sphi 0, %s53
      %s54 = sphi 0, %s51
      %s55 = sphi 0, %s54
      %s71 = sphi 0, %s55
      %s85 = sphi 0, %s87
      %s88 = sphi 0, %s85
      %s89 = sphi 0, %s88
      %s105 = sphi 0, %s89
      %s113 = sphi 0, %s115
      %s116 = sphi 0, %s113
      %s117 = sphi 0, %s116
      %s133 = sphi 0, %s117
    $region4: #{tpu_custom_call.1} parent=1 // loop_header_branch
      %17 = sbr.rel (%p15) target = $region8
    $region5: #{tpu_custom_call.1} parent=1 // loop_body
      %s19 = ssub.s32 %s14, 1
      %s20 = ssub.s32 %s14, 2
      %s30 = sadd.s32 1, %s23
      %p31 = scmp.ge.s32.totalorder %s30, 1
      %s32 = scalar_select %p31, 0, %s30
      %s33 = sadd.s32 1, %s22
      %s34 = scalar_select %p31, %s33, %s22
      %p35 = scmp.ge.s32.totalorder %s34, 1
      %s36 = scalar_select %p35, 0, %s34
      %s37 = sadd.s32 1, %s21
      %s38 = scalar_select %p35, %s37, %s21
      %p39 = scmp.ge.s32.totalorder %s38, 2
      %s40 = scalar_select %p39, 0, %s38
      %s41 = sadd.s32 %s22, %s23
      %p42 = scmp.lt.s32.totalorder %s41, 0
      %s43 = scalar_select %p42, %s41, 0
      %s44 = sadd.s32 %s36, %s32
      %p45 = scmp.lt.s32.totalorder %s44, 0
      %s46 = scalar_select %p45, %s44, 0
      %s47 = ssub.s32 %s21, %s40
      %s48 = ssub.s32 %s43, %s46
      %s49 = sor.u32 %s47, %s48
      %p50 = scmp.eq.s32.totalorder %s49, 0
      %s52 = sadd.s32 %s51, 1
      %s53 = scalar_select %p50, %s51, %s52
      %p56 = pneg %p50
      %p57 = scmp.eq.s32.totalorder %s14, 1
      %p58 = por %p56, %p57
      %p59 = scmp.ne.s32.totalorder %s51, %s54
      %p60 = scmp.eq.s32.totalorder %s14, 0
      %p61 = por %p59, %p60
      %p62 = scmp.ne.s32.totalorder %s51, %s54
      %p63 = scmp.eq.s32.totalorder %s19, 1
      %p64 = por %p62, %p63
      %p65 = scmp.ne.s32.totalorder %s54, %s55
      %p66 = scmp.eq.s32.totalorder %s19, 0
      %p67 = por %p65, %p66
      %p68 = scmp.ne.s32.totalorder %s54, %s55
      %p69 = scmp.eq.s32.totalorder %s20, 1
      %p70 = por %p68, %p69
      %p72 = scmp.ne.s32.totalorder %s55, %s71
      %p73 = scmp.eq.s32.totalorder %s20, 0
      %p74 = por %p72, %p73
      %s75 = sadd.s32 %s22, %s23
      %p76 = scmp.lt.s32.totalorder %s75, 0
      %s77 = scalar_select %p76, %s75, 0
      %s78 = sadd.s32 %s36, %s32
      %p79 = scmp.lt.s32.totalorder %s78, 0
      %s80 = scalar_select %p79, %s78, 0
      %s81 = ssub.s32 %s21, %s40
      %s82 = ssub.s32 %s77, %s80
      %s83 = sor.u32 %s81, %s82
      %p84 = scmp.eq.s32.totalorder %s83, 0
      %s86 = sadd.s32 %s85, 1
      %s87 = scalar_select %p84, %s85, %s86
      %p90 = pneg %p84
      %p91 = scmp.eq.s32.totalorder %s14, 1
      %p92 = por %p90, %p91
      %p93 = scmp.ne.s32.totalorder %s85, %s88
      %p94 = scmp.eq.s32.totalorder %s14, 0
      %p95 = por %p93, %p94
      %p96 = scmp.ne.s32.totalorder %s85, %s88
      %p97 = scmp.eq.s32.totalorder %s19, 1
      %p98 = por %p96, %p97
      %p99 = scmp.ne.s32.totalorder %s88, %s89
      %p100 = scmp.eq.s32.totalorder %s19, 0
      %p101 = por %p99, %p100
      %p102 = scmp.ne.s32.totalorder %s88, %s89
      %p103 = scmp.eq.s32.totalorder %s20, 1
      %p104 = por %p102, %p103
      %p106 = scmp.ne.s32.totalorder %s89, %s105
      %p107 = scmp.eq.s32.totalorder %s20, 0
      %p108 = por %p106, %p107
      %s109 = ssub.s32 %s21, %s40
      %s110 = ssub.s32 %s22, %s36
      %s111 = sor.u32 %s109, %s110
      %p112 = scmp.eq.s32.totalorder %s111, 0
      %s114 = sadd.s32 %s113, 1
      %s115 = scalar_select %p112, %s113, %s114
      %p118 = pneg %p112
      %p119 = scmp.eq.s32.totalorder %s14, 1
      %p120 = por %p118, %p119
      %p121 = scmp.ne.s32.totalorder %s113, %s116
      %p122 = scmp.eq.s32.totalorder %s14, 0
      %p123 = por %p121, %p122
      %p124 = scmp.ne.s32.totalorder %s113, %s116
      %p125 = scmp.eq.s32.totalorder %s19, 1
      %p126 = por %p124, %p125
      %p127 = scmp.ne.s32.totalorder %s116, %s117
      %p128 = scmp.eq.s32.totalorder %s19, 0
      %p129 = por %p127, %p128
      %p130 = scmp.ne.s32.totalorder %s116, %s117
      %p131 = scmp.eq.s32.totalorder %s20, 1
      %p132 = por %p130, %p131
      %p134 = scmp.ne.s32.totalorder %s117, %s133
      %p135 = scmp.eq.s32.totalorder %s20, 0
      %p136 = por %p134, %p135
      %p137 = scmp.le.s32.totalorder 1, %s14
      %p138 = scmp.lt.s32.totalorder %s14, 3
      %p139 = pnand %p137, %p138
      %p140 = pneg %p139
      // Predicated region
      $region9: #{tpu_custom_call.1} parent=5 // pred_check
        _
      $region10: #{tpu_custom_call.1} parent=5 // pred_check_branch
        %142 = sbr.rel (%p139) target = $region12
      $region11: #{tpu_custom_call.1} parent=5 // pred_region
        %s143 = ssub.s32 %s14, 1
      $region12: #{tpu_custom_call.1} parent=5 // pred_fallthru
        _
      %p144 = scmp.lt.s32.totalorder %s14, 2
      // Predicated region
      $region13: #{tpu_custom_call.1} parent=5 // pred_check
        %p145 = pneg %p144
      $region14: #{tpu_custom_call.1} parent=5 // pred_check_branch
        %147 = sbr.rel (%p145) target = $region16
      $region15: #{tpu_custom_call.1} parent=5 // pred_region
        // Predicated region
        $region17: #{tpu_custom_call.1} parent=15 // pred_check
          %p148 = pneg %p61
        $region18: #{tpu_custom_call.1} parent=15 // pred_check_branch
          %150 = sbr.rel (%p148) target = $region20
        $region19: #{tpu_custom_call.1} parent=15 // pred_region
          %s151 = sand.u32 %s51, 1
          %s152 = scalar_lea.sflag [#allocation3], %s151
          %s153 = sand.u32 %s51, 1
          %s154 = smul.addr %s153, 80
          %s155 = scalar_lea.vmem [#allocation2], %s154
          %s156 = sadd.s32 %s22, %s23
          %p157 = scmp.lt.s32.totalorder %s156, 0
          %s158 = scalar_select %p157, %s156, 0
          %s159 = smul.u32 2, %s158
          %s161 = ssub.s32 1280, 1280
          %162 = vsyncadd %s152, %s161
          %s163 = smul.addr %s21, 10
          %s164 = sadd.s32 %s159, %s163
          %s165 = smul.addr %s164, 128
          %s166 = scalar_lea.hbm %s0, %s165
          %s167 = sshll.u32 %s155, 4
          %s168 = int_to_ptr.vmem [resolvable:$true] %s167
          %173 = dma.hbm_to_vmem [thread:$0]  %s166, 1280, %s168, %s152, 128, 128, 8
        $region20: #{tpu_custom_call.1} parent=15 // pred_fallthru
          _
        // Predicated region
        $region21: #{tpu_custom_call.1} parent=15 // pred_check
          %p174 = pneg %p95
        $region22: #{tpu_custom_call.1} parent=15 // pred_check_branch
          %176 = sbr.rel (%p174) target = $region24
        $region23: #{tpu_custom_call.1} parent=15 // pred_region
          %s177 = sand.u32 %s85, 1
          %s178 = scalar_lea.sflag [#allocation5], %s177
          %s179 = sand.u32 %s85, 1
          %s180 = smul.addr %s179, 16
          %s181 = scalar_lea.vmem [#allocation4], %s180
          %s182 = sadd.s32 %s22, %s23
          %p183 = scmp.lt.s32.totalorder %s182, 0
          %s184 = scalar_select %p183, %s182, 0
          %s185 = smul.u32 2, %s184
          %s187 = ssub.s32 256, 256
          %188 = vsyncadd %s178, %s187
          %s189 = smul.addr %s21, 2
          %s190 = sadd.s32 %s185, %s189
          %s191 = smul.addr %s190, 128
          %s192 = scalar_lea.hbm %s1, %s191
          %s193 = sshll.u32 %s181, 4
          %s194 = int_to_ptr.vmem [resolvable:$true] %s193
          %199 = dma.hbm_to_vmem [thread:$0]  %s192, 256, %s194, %s178, 128, 128, 8
        $region24: #{tpu_custom_call.1} parent=15 // pred_fallthru
          _
      $region16: #{tpu_custom_call.1} parent=5 // pred_fallthru
        _
      %p200 = scmp.le.s32.totalorder 1, %s14
      %p201 = scmp.lt.s32.totalorder %s14, 3
      %p202 = pnand %p200, %p201
      %p203 = pneg %p202
      // Predicated region
      $region25: #{tpu_custom_call.1} parent=5 // pred_check
        _
      $region26: #{tpu_custom_call.1} parent=5 // pred_check_branch
        %205 = sbr.rel (%p202) target = $region28
      $region27: #{tpu_custom_call.1} parent=5 // pred_region
        %s206 = ssub.s32 %s14, 1
        %s207 = sand.u32 %s54, 1
        %s208 = scalar_lea.sflag [#allocation3], %s207
        %s209 = sand.u32 %s54, 1
        %s210 = smul.addr %s209, 80
        %s211 = scalar_lea.vmem [#allocation2], %s210
        // Predicated region
        $region29: #{tpu_custom_call.1} parent=27 // pred_check
          %p212 = pneg %p67
        $region30: #{tpu_custom_call.1} parent=27 // pred_check_branch
          %214 = sbr.rel (%p212) target = $region32
        $region31: #{tpu_custom_call.1} parent=27 // pred_region
          %215 = dma.done %s208, 1280
        $region32: #{tpu_custom_call.1} parent=27 // pred_fallthru
          _
        %s216 = sand.u32 %s88, 1
        %s217 = scalar_lea.sflag [#allocation5], %s216
        %s218 = sand.u32 %s88, 1
        %s219 = smul.addr %s218, 16
        %s220 = scalar_lea.vmem [#allocation4], %s219
        // Predicated region
        $region33: #{tpu_custom_call.1} parent=27 // pred_check
          %p221 = pneg %p101
        $region34: #{tpu_custom_call.1} parent=27 // pred_check_branch
          %223 = sbr.rel (%p221) target = $region36
        $region35: #{tpu_custom_call.1} parent=27 // pred_region
          %224 = dma.done %s217, 256
        $region36: #{tpu_custom_call.1} parent=27 // pred_fallthru
          _
        %s225 = sand.u32 %s54, 1
        %s226 = scalar_lea.sflag [#allocation3], %s225
        %s227 = sand.u32 %s54, 1
        %s228 = smul.addr %s227, 80
        %s229 = scalar_lea.vmem [#allocation2], %s228
        %p230 = pneg %p67
        %p231 = pneg %p64
        %s232 = sand.u32 %s88, 1
        %s233 = scalar_lea.sflag [#allocation5], %s232
        %s234 = sand.u32 %s88, 1
        %s235 = smul.addr %s234, 16
        %s236 = scalar_lea.vmem [#allocation4], %s235
        %p237 = pneg %p101
        %p238 = pneg %p98
        %p239 = pneg %p129
        %p240 = pneg %p126
        %p241 = scmp.lt.s32.totalorder %s24, 1
        %s242 = scalar_select %p241, %s24, 1
        %p243 = scmp.lt.s32.totalorder %s25, 0
        %s244 = scalar_select %p243, %s25, 0
        %s245 = sadd.s32 %s244, %s242
        %s246 = smul.addr %s245, 4
        %s247 = scalar_lea.vmem %s2, %s246
        %s248 = sadd.s32 %s25, %s26
        %p249 = scmp.lt.s32.totalorder %s248, 0
        %s250 = scalar_select %p249, %s248, 0
        %s251 = smul.u32 2, %s250
        %s252 = sadd.s32 %s25, %s26
        %p253 = scmp.lt.s32.totalorder %s252, 0
        %s254 = scalar_select %p253, %s252, 0
        %s255 = smul.u32 2, %s254
        %p256 = scmp.lt.s32.totalorder %s24, 1
        %s257 = scalar_select %p256, %s24, 1
        %p258 = scmp.lt.s32.totalorder %s25, 0
        %s259 = scalar_select %p258, %s25, 0
        %s260 = sadd.s32 %s259, %s257
        %s261 = smul.addr %s260, 4
        %s262 = scalar_lea.vmem %s2, %s261
        %p263 = scmp.eq.s32.totalorder %s26, 0
        // Predicated region
        $region37: #{tpu_custom_call.1} parent=27 // pred_check
          %p264 = pneg %p263
        $region38: #{tpu_custom_call.1} parent=27 // pred_check_branch
          %266 = sbr.rel (%p264) target = $region40
        $region39: #{tpu_custom_call.1} parent=27 // pred_region
          %vm267 = vcmask 124928
          %268 = vst.msk [vmem:[%s262] sm:$0x7] %vm267, 0.0
        $region40: #{tpu_custom_call.1} parent=27 // pred_fallthru
          _
        %v269 = vld [vmem:[%s211] sm:$0xff]
        %v270 = vld [vmem:[%s211 + $0x8] sm:$0xff]
        %s271 = scalar_lea.vmem %s211, 16 [#allocation2]
        %v272 = vld [vmem:[%s271] sm:$0xff]
        %v273 = vld [vmem:[%s271 + $0x8] sm:$0xff]
        %v274 = vmax.f32 %v269, %v272
        %v275 = vmax.f32 %v270, %v273
        %s276 = scalar_lea.vmem %s211, 32 [#allocation2]
        %v277 = vld [vmem:[%s276] sm:$0xff]
        %v278 = vld [vmem:[%s276 + $0x8] sm:$0xff]
        %v279 = vmax.f32 %v274, %v277
        %v280 = vmax.f32 %v275, %v278
        %s281 = scalar_lea.vmem %s211, 48 [#allocation2]
        %v282 = vld [vmem:[%s281] sm:$0xff]
        %v283 = vld [vmem:[%s281 + $0x8] sm:$0xff]
        %v284 = vmax.f32 %v279, %v282
        %v285 = vmax.f32 %v280, %v283
        %s286 = scalar_lea.vmem %s211, 64 [#allocation2]
        %v287 = vld [vmem:[%s286] sm:$0xff]
        %v288 = vld [vmem:[%s286 + $0x8] sm:$0xff]
        %v289 = vmax.f32 %v284, %v287
        %v290 = vmax.f32 %v285, %v288
        %v291 = vld [vmem:[%s220] sm:$0xff]
        %v292 = vld [vmem:[%s220 + $0x8] sm:$0xff]
        %v293 = vsub.f32 %v272, %v289
        %v294 = vsub.f32 %v273, %v290
        %vm295 = vcmp.gt.f32.partialorder %v293, -87.0
        %vm296 = vcmp.gt.f32.partialorder %v294, -87.0
        %vm297 = vcmp.eq.s32.totalorder %v291, 1
        %vm298 = vcmp.eq.s32.totalorder %v292, 1
        %vm299 = vmand %vm295, %vm297
        %vm300 = vmand %vm296, %vm298
        %v301 = vsel %vm299, 1, 0
        %v302 = vsel %vm300, 1, 0
        %v303 = vcvt.s32.f32 %v301
        %v304 = vcvt.s32.f32 %v302
        %vm305 = vcmask 130048
        %v306 = vsel %vm305, %v303, 0.0
        %v307 = vsel %vm305, %v304, 0.0
        %v308 = vadd.f32 %v306, %v307
        %v309 = vrot.slane %v308, 4
        %v310 = vadd.f32 %v308, %v309
        %v311 = vrot.slane %v310, 2
        %v312 = vadd.f32 %v310, %v311
        %v313 = vrot.slane %v312, 1
        %v314 = vadd.f32 %v312, %v313
        %v315 = vadd.f32 %v314, 0.0
        %v316 = vsel %vm295, 1, 0
        %v317 = vsel %vm296, 1, 0
        %v318 = vcvt.s32.f32 %v316
        %v319 = vcvt.s32.f32 %v317
        %v320 = vsel %vm305, %v318, 0.0
        %v321 = vsel %vm305, %v319, 0.0
        %v322 = vadd.f32 %v320, %v321
        %v323 = vrot.slane %v322, 4
        %v324 = vadd.f32 %v322, %v323
        %v325 = vrot.slane %v324, 2
        %v326 = vadd.f32 %v324, %v325
        %v327 = vrot.slane %v326, 1
        %v328 = vadd.f32 %v326, %v327
        %v329 = vadd.f32 %v328, 0.0
        %v330 = vsel %vm297, 1, 0
        %v331 = vsel %vm298, 1, 0
        %v332 = vcvt.s32.f32 %v330
        %v333 = vcvt.s32.f32 %v331
        %v334 = vsel %vm305, %v332, 0.0
        %v335 = vsel %vm305, %v333, 0.0
        %v336 = vadd.f32 %v334, %v335
        %v337 = vrot.slane %v336, 4
        %v338 = vadd.f32 %v336, %v337
        %v339 = vrot.slane %v338, 2
        %v340 = vadd.f32 %v338, %v339
        %v341 = vrot.slane %v340, 1
        %v342 = vadd.f32 %v340, %v341
        %v343 = vadd.f32 %v342, 0.0
        %v344 = vsub.f32 %v277, %v289
        %v345 = vsub.f32 %v278, %v290
        %vm346 = vcmp.gt.f32.partialorder %v344, -87.0
        %vm347 = vcmp.gt.f32.partialorder %v345, -87.0
        %vm348 = vcmp.eq.s32.totalorder %v291, 2
        %vm349 = vcmp.eq.s32.totalorder %v292, 2
        %vm350 = vmand %vm346, %vm348
        %vm351 = vmand %vm347, %vm349
        %v352 = vsel %vm350, 1, 0
        %v353 = vsel %vm351, 1, 0
        %v354 = vcvt.s32.f32 %v352
        %v355 = vcvt.s32.f32 %v353
        %v356 = vsel %vm305, %v354, 0.0
        %v357 = vsel %vm305, %v355, 0.0
        %v358 = vadd.f32 %v356, %v357
        %v359 = vrot.slane %v358, 4
        %v360 = vadd.f32 %v358, %v359
        %v361 = vrot.slane %v360, 2
        %v362 = vadd.f32 %v360, %v361
        %v363 = vrot.slane %v362, 1
        %v364 = vadd.f32 %v362, %v363
        %v365 = vadd.f32 %v315, %v364
        %v366 = vsel %vm346, 1, 0
        %v367 = vsel %vm347, 1, 0
        %v368 = vcvt.s32.f32 %v366
        %v369 = vcvt.s32.f32 %v367
        %v370 = vsel %vm305, %v368, 0.0
        %v371 = vsel %vm305, %v369, 0.0
        %v372 = vadd.f32 %v370, %v371
        %v373 = vrot.slane %v372, 4
        %v374 = vadd.f32 %v372, %v373
        %v375 = vrot.slane %v374, 2
        %v376 = vadd.f32 %v374, %v375
        %v377 = vrot.slane %v376, 1
        %v378 = vadd.f32 %v376, %v377
        %v379 = vadd.f32 %v329, %v378
        %v380 = vsel %vm348, 1, 0
        %v381 = vsel %vm349, 1, 0
        %v382 = vcvt.s32.f32 %v380
        %v383 = vcvt.s32.f32 %v381
        %v384 = vsel %vm305, %v382, 0.0
        %v385 = vsel %vm305, %v383, 0.0
        %v386 = vadd.f32 %v384, %v385
        %v387 = vrot.slane %v386, 4
        %v388 = vadd.f32 %v386, %v387
        %v389 = vrot.slane %v388, 2
        %v390 = vadd.f32 %v388, %v389
        %v391 = vrot.slane %v390, 1
        %v392 = vadd.f32 %v390, %v391
        %v393 = vadd.f32 %v343, %v392
        %v394 = vsub.f32 %v282, %v289
        %v395 = vsub.f32 %v283, %v290
        %vm396 = vcmp.gt.f32.partialorder %v394, -87.0
        %vm397 = vcmp.gt.f32.partialorder %v395, -87.0
        %vm398 = vcmp.eq.s32.totalorder %v291, 3
        %vm399 = vcmp.eq.s32.totalorder %v292, 3
        %vm400 = vmand %vm396, %vm398
        %vm401 = vmand %vm397, %vm399
        %v402 = vsel %vm400, 1, 0
        %v403 = vsel %vm401, 1, 0
        %v404 = vcvt.s32.f32 %v402
        %v405 = vcvt.s32.f32 %v403
        %v406 = vsel %vm305, %v404, 0.0
        %v407 = vsel %vm305, %v405, 0.0
        %v408 = vadd.f32 %v406, %v407
        %v409 = vrot.slane %v408, 4
        %v410 = vadd.f32 %v408, %v409
        %v411 = vrot.slane %v410, 2
        %v412 = vadd.f32 %v410, %v411
        %v413 = vrot.slane %v412, 1
        %v414 = vadd.f32 %v412, %v413
        %v415 = vadd.f32 %v365, %v414
        %v416 = vsel %vm396, 1, 0
        %v417 = vsel %vm397, 1, 0
        %v418 = vcvt.s32.f32 %v416
        %v419 = vcvt.s32.f32 %v417
        %v420 = vsel %vm305, %v418, 0.0
        %v421 = vsel %vm305, %v419, 0.0
        %v422 = vadd.f32 %v420, %v421
        %v423 = vrot.slane %v422, 4
        %v424 = vadd.f32 %v422, %v423
        %v425 = vrot.slane %v424, 2
        %v426 = vadd.f32 %v424, %v425
        %v427 = vrot.slane %v426, 1
        %v428 = vadd.f32 %v426, %v427
        %v429 = vadd.f32 %v379, %v428
        %v430 = vsel %vm398, 1, 0
        %v431 = vsel %vm399, 1, 0
        %v432 = vcvt.s32.f32 %v430
        %v433 = vcvt.s32.f32 %v431
        %v434 = vsel %vm305, %v432, 0.0
        %v435 = vsel %vm305, %v433, 0.0
        %v436 = vadd.f32 %v434, %v435
        %v437 = vrot.slane %v436, 4
        %v438 = vadd.f32 %v436, %v437
        %v439 = vrot.slane %v438, 2
        %v440 = vadd.f32 %v438, %v439
        %v441 = vrot.slane %v440, 1
        %v442 = vadd.f32 %v440, %v441
        %v443 = vadd.f32 %v393, %v442
        %v444 = vsub.f32 %v287, %v289
        %v445 = vsub.f32 %v288, %v290
        %vm446 = vcmp.gt.f32.partialorder %v444, -87.0
        %vm447 = vcmp.gt.f32.partialorder %v445, -87.0
        %vm448 = vcmp.eq.s32.totalorder %v291, 4
        %vm449 = vcmp.eq.s32.totalorder %v292, 4
        %vm450 = vmand %vm446, %vm448
        %vm451 = vmand %vm447, %vm449
        %v452 = vsel %vm450, 1, 0
        %v453 = vsel %vm451, 1, 0
        %v454 = vcvt.s32.f32 %v452
        %v455 = vcvt.s32.f32 %v453
        %v456 = vsel %vm305, %v454, 0.0
        %v457 = vsel %vm305, %v455, 0.0
        %v458 = vadd.f32 %v456, %v457
        %v459 = vrot.slane %v458, 4
        %v460 = vadd.f32 %v458, %v459
        %v461 = vrot.slane %v460, 2
        %v462 = vadd.f32 %v460, %v461
        %v463 = vrot.slane %v462, 1
        %v464 = vadd.f32 %v462, %v463
        %v465 = vadd.f32 %v415, %v464
        %v466 = vsel %vm446, 1, 0
        %v467 = vsel %vm447, 1, 0
        %v468 = vcvt.s32.f32 %v466
        %v469 = vcvt.s32.f32 %v467
        %v470 = vsel %vm305, %v468, 0.0
        %v471 = vsel %vm305, %v469, 0.0
        %v472 = vadd.f32 %v470, %v471
        %v473 = vrot.slane %v472, 4
        %v474 = vadd.f32 %v472, %v473
        %v475 = vrot.slane %v474, 2
        %v476 = vadd.f32 %v474, %v475
        %v477 = vrot.slane %v476, 1
        %v478 = vadd.f32 %v476, %v477
        %v479 = vadd.f32 %v429, %v478
        %v480 = vsel %vm448, 1, 0
        %v481 = vsel %vm449, 1, 0
        %v482 = vcvt.s32.f32 %v480
        %v483 = vcvt.s32.f32 %v481
        %v484 = vsel %vm305, %v482, 0.0
        %v485 = vsel %vm305, %v483, 0.0
        %v486 = vadd.f32 %v484, %v485
        %v487 = vrot.slane %v486, 4
        %v488 = vadd.f32 %v486, %v487
        %v489 = vrot.slane %v488, 2
        %v490 = vadd.f32 %v488, %v489
        %v491 = vrot.slane %v490, 1
        %v492 = vadd.f32 %v490, %v491
        %v493 = vadd.f32 %v443, %v492
        %v494 = vld [vmem:[%s262] sm:$0x1]
        %v495 = vadd.f32 %v494, %v465
        %vm496 = vcmask 122880
        %497 = vst.msk [vmem:[%s262] sm:$0x1] %vm496, %v495
        %v498 = vld [vmem:[%s262 + $0x1] sm:$0x1]
        %v499 = vadd.f32 %v498, %v479
        %500 = vst.msk [vmem:[%s262 + $0x1] sm:$0x1] %vm496, %v499
        %v501 = vld [vmem:[%s262 + $0x2] sm:$0x1]
        %v502 = vadd.f32 %v501, %v493
        %503 = vst.msk [vmem:[%s262 + $0x2] sm:$0x1] %vm496, %v502
        %p504 = scmp.lt.s32.totalorder %s24, 1
        %s505 = scalar_select %p504, %s24, 1
        %p506 = scmp.lt.s32.totalorder %s25, 0
        %s507 = scalar_select %p506, %s25, 0
        %s508 = sadd.s32 %s507, %s505
        %s509 = smul.addr %s508, 4
        %s510 = scalar_lea.vmem %s2, %s509
        // Predicated region
        $region41: #{tpu_custom_call.1} parent=27 // pred_check
          %p511 = pneg %p126
        $region42: #{tpu_custom_call.1} parent=27 // pred_check_branch
          %513 = sbr.rel (%p511) target = $region44
        $region43: #{tpu_custom_call.1} parent=27 // pred_region
          _
        $region44: #{tpu_custom_call.1} parent=27 // pred_fallthru
          _
      $region28: #{tpu_custom_call.1} parent=5 // pred_fallthru
        _
      %p514 = scmp.le.s32.totalorder 2, %s14
      // Predicated region
      $region45: #{tpu_custom_call.1} parent=5 // pred_check
        %p515 = pneg %p514
      $region46: #{tpu_custom_call.1} parent=5 // pred_check_branch
        %517 = sbr.rel (%p515) target = $region48
      $region47: #{tpu_custom_call.1} parent=5 // pred_region
        %s518 = ssub.s32 %s14, 2
        // Predicated region
        $region49: #{tpu_custom_call.1} parent=47 // pred_check
          %p519 = pneg %p132
        $region50: #{tpu_custom_call.1} parent=47 // pred_check_branch
          %521 = sbr.rel (%p519) target = $region52
        $region51: #{tpu_custom_call.1} parent=47 // pred_region
          %p522 = scmp.lt.s32.totalorder %s27, 1
          %s523 = scalar_select %p522, %s27, 1
          %p524 = scmp.lt.s32.totalorder %s28, 0
          %s525 = scalar_select %p524, %s28, 0
          %s526 = sadd.s32 %s525, %s523
          %s527 = smul.addr %s526, 4
          %s528 = scalar_lea.vmem %s2, %s527
        $region52: #{tpu_custom_call.1} parent=47 // pred_fallthru
          _
      $region48: #{tpu_custom_call.1} parent=5 // pred_fallthru
        _
    $region6: #{tpu_custom_call.1} parent=1 // loop_footer
      %s18 = sadd.s32 1, %s14
    $region7: #{tpu_custom_call.1} parent=1 // loop_footer_branch
      %13 = sbr.rel target = $region3
    $region8: #{tpu_custom_call.1} parent=1 // loop_exit
      _
    %529 = vsyncpa [#allocation3], 1
    %s530 = scalar_lea.sflag [#allocation3], 1
    %531 = vsyncpa %s530, 1
    %532 = vsyncpa [#allocation5], 1
    %s533 = scalar_lea.sflag [#allocation5], 1
    %534 = vsyncpa %s533, 1

</llo_original>
